<compile_context>
chip_gen: v7x
topology: tpu7x:2x2x1
jax: 0.10.0
libtpu: 0.0.40
codegen_flags: <defaults>
</compile_context>

<pallas_src>
import jax
import jax.numpy as jnp
from jax.experimental import pallas as pl
from jax.experimental.pallas import tpu as pltpu

N_ACT = 4               # layers[1] == layers[-2]: number of activation networks P_i
IN_DIM = 2              # layers[0]: (x, t)
OUT_DIM = 1             # layers[2]
HID = 32                # hidden width of each synthetic activation network P_i
WIDE = N_ACT * HID      # 128: batched lane-dense width


# ---------------------------------------------------------------------------
# Kernel: everything batched to 128 lanes, batch (collocation points) on lanes.
# ---------------------------------------------------------------------------
def gpt_forward_kernel(xT_ref, a1T_ref, c1T_ref, a2T_ref, c2T_ref, wT_ref, b_ref,
                       out_ref):
    # xT: (IN_DIM, TN) -- batch on the lane axis.
    x0 = xT_ref[0:1, :]                                       # (1, TN)
    x1 = xT_ref[1:2, :]                                       # (1, TN)
    a1T = a1T_ref[...]                                        # (WIDE, 2)

    # fused shift-linear + first activation layer: two rank-1 FMAs on the VPU
    # (K=2 is far too small to be worth the MXU)
    h1 = jnp.tanh(a1T[:, 0:1] * x0 + a1T[:, 1:2] * x1
                  + c1T_ref[...])                             # (WIDE, TN)

    # all four P_i second layers as ONE dense 128x128 MXU matmul (block-diag weight)
    h2 = jnp.tanh(jnp.dot(a2T_ref[...], h1,
                          preferred_element_type=jnp.float32)
                  + c2T_ref[...])                             # (WIDE, TN)

    # fused a3 * c_initial read-out + (c3 @ c_initial.T + bias): one MXU matvec,
    # lane-dense (1, TN) store (no masked vst, no cross-lane reductions).
    out_ref[...] = (jnp.dot(wT_ref[...], h2,
                            preferred_element_type=jnp.float32)
                    + b_ref[...])                             # (OUT_DIM, TN)


# ---------------------------------------------------------------------------
# Wrapper
# ---------------------------------------------------------------------------
def gpt_forward(x, fused_params, *, tile_n=2048):
    """x: (N, IN_DIM) f32.  Returns (N, OUT_DIM) f32."""
    N = x.shape[0]
    assert x.shape[1] == IN_DIM
    a1T, c1T, a2T, c2T, wT, b = fused_params

    # effective tile: multiple of 128, no larger than the 128-rounded N
    n128 = ((N + 127) // 128) * 128
    tile = min(int(tile_n), n128)
    tile = max(128, (tile // 128) * 128)
    n_pad = ((N + tile - 1) // tile) * tile

    # batch-on-lanes layout: pad and transpose (cheap host-side XLA ops)
    xT = jnp.zeros((IN_DIM, n_pad), jnp.float32).at[:, :N].set(
        x.astype(jnp.float32).T)

    def const_spec(arr):
        # constant block index -> Pallas keeps the block resident (no re-DMA per tile)
        return pl.BlockSpec(arr.shape, lambda i: (0, 0))

    out = pl.pallas_call(
        gpt_forward_kernel,
        out_shape=jax.ShapeDtypeStruct((OUT_DIM, n_pad), jnp.float32),
        grid=(n_pad // tile,),
        in_specs=[pl.BlockSpec((IN_DIM, tile), lambda i: (0, i))]
                 + [const_spec(p) for p in fused_params],
        out_specs=pl.BlockSpec((OUT_DIM, tile), lambda i: (0, i)),
        compiler_params=pltpu.CompilerParams(
            dimension_semantics=("parallel",),       # shards tiles across TCs on v7x
            vmem_limit_bytes=32 * 1024 * 1024,       # explicit, fits v7x 64 MiB VMEM
        ),
    )(xT, a1T, c1T, a2T, c2T, wT, b)

    return out[:, :N].T                              # (N, OUT_DIM)


# ---------------------------------------------------------------------------
# Host-side algebraic fusion of the raw module parameters (forward-only).
# ---------------------------------------------------------------------------
def fuse_params(raw):
    ws, bs, a1, c1, a2, c2, a3, c3, cfin, bfin = raw
    f32 = jnp.float32
    A1_cols, C1_cols, C2_cols, W_cols = [], [], [], []
    for i in range(N_ACT):
        A1_cols.append(ws[i] @ a1[i])                 # (2, HID)   shift folded in
        C1_cols.append(bs[i] @ a1[i] + c1[i])         # (1, HID)
        C2_cols.append(c2[i])                         # (1, HID)
        W_cols.append(a3[i] * cfin[0, i])             # (1, HID)   a3 fused with c_initial
    A1 = jnp.concatenate(A1_cols, axis=1)             # (2, WIDE)
    C1 = jnp.concatenate(C1_cols, axis=1)             # (1, WIDE)
    C2 = jnp.concatenate(C2_cols, axis=1)             # (1, WIDE)
    W = jnp.concatenate(W_cols, axis=1)               # (1, WIDE)
    A2 = jnp.zeros((WIDE, WIDE), f32)
    for i in range(N_ACT):
        A2 = A2.at[i * HID:(i + 1) * HID, i * HID:(i + 1) * HID].set(a2[i])
    b = c3 @ cfin.T + bfin                            # (1, 1)
    # transposed (batch-on-lanes) layout for the kernel
    return (A1.T.astype(f32), C1.T.astype(f32), A2.T.astype(f32),
            C2.T.astype(f32), W.astype(f32), b.astype(f32))


# ---------------------------------------------------------------------------
# Pure-JAX reference on the RAW (unfused) parameters -> validates the fusion.
# ---------------------------------------------------------------------------
def gpt_forward_ref(x, raw):
    ws, bs, a1, c1, a2, c2, a3, c3, cfin, bfin = raw
    cols = []
    for i in range(N_ACT):
        shift = x @ ws[i] + bs[i]
        h1 = jnp.tanh(shift @ a1[i] + c1[i])
        h2 = jnp.tanh(h1 @ a2[i] + c2[i])
        cols.append(jnp.sum(h2 * a3[i], axis=1, keepdims=True))
    u = jnp.concatenate(cols, axis=1) + c3
    return jnp.sum(u * cfin, axis=1, keepdims=True) + bfin


def make_params(key):
    ks = jax.random.split(key, 6)
    f32 = jnp.float32
    # shift linears: identity weight, zero bias (exactly as in GPT.__init__)
    ws = jnp.tile(jnp.eye(IN_DIM, dtype=f32)[None], (N_ACT, 1, 1))      # (N_ACT, 2, 2)
    bs = jnp.zeros((N_ACT, 1, IN_DIM), f32)                             # (N_ACT, 1, 2)
    # synthetic pre-trained activation networks P_i (tanh MLPs)
    a1 = 0.5 * jax.random.normal(ks[0], (N_ACT, IN_DIM, HID), f32)
    c1 = 0.1 * jax.random.normal(ks[1], (N_ACT, 1, HID), f32)
    a2 = 0.3 * jax.random.normal(ks[2], (N_ACT, HID, HID), f32)
    c2 = 0.1 * jax.random.normal(ks[3], (N_ACT, 1, HID), f32)
    a3 = 0.3 * jax.random.normal(ks[4], (N_ACT, 1, HID), f32)
    c3 = jnp.zeros((1, N_ACT), f32)
    # final linear: weight = c_initial (OUT_DIM x N_ACT), zero bias
    cfin = 0.5 * jax.random.normal(ks[5], (OUT_DIM, N_ACT), f32)        # (1, N_ACT)
    bfin = jnp.zeros((OUT_DIM, OUT_DIM), f32)                           # (1, 1), zero
    return (ws, bs, a1, c1, a2, c2, a3, c3, cfin, bfin)
    # TODO(synk): loss terms (lossR/lossR0/lossIC/lossBC/lossRH) use autograd and are
    # training-time code, not part of forward(); not translated.


if __name__ == "__main__":
    key = jax.random.PRNGKey(0)
    k_x, k_p = jax.random.split(key)

    # small deterministic test: N not a multiple of 128 (exercises pad/slice path),
    # tile_n=256 -> grid of 2 (exercises multi-tile + v7x two-core sharding).
    N = 500
    x_data = jax.random.uniform(k_x, (N, IN_DIM), jnp.float32, minval=-1.0, maxval=1.0)
    raw = make_params(k_p)
    fused = fuse_params(raw)

    out = gpt_forward(x_data, fused, tile_n=256)
    out = jax.block_until_ready(out)

    ref = gpt_forward_ref(x_data, raw)
    assert out.shape == (N, OUT_DIM)
    assert jnp.allclose(out, ref, atol=1e-5, rtol=1e-5), float(jnp.max(jnp.abs(out - ref)))
    print("KERNEL_OK")
</pallas_src>

<mosaic_0001>
module attributes {stable_mosaic.version = 11 : i64} {
  func.func @gpt_forward_kernel(%arg0: i32, %arg1: memref<2x256xf32, #tpu.memory_space<vmem>>, %arg2: memref<128x2xf32, #tpu.memory_space<vmem>>, %arg3: memref<128x1xf32, #tpu.memory_space<vmem>>, %arg4: memref<128x128xf32, #tpu.memory_space<vmem>>, %arg5: memref<128x1xf32, #tpu.memory_space<vmem>>, %arg6: memref<1x128xf32, #tpu.memory_space<vmem>>, %arg7: memref<1x1xf32, #tpu.memory_space<vmem>>, %arg8: memref<1x256xf32, #tpu.memory_space<vmem>>) attributes {dimension_semantics = [#tpu.dimension_semantics<parallel>], iteration_bounds = array<i64: 2>, scalar_prefetch = 0 : i64, scratch_operands = 0 : i64, tpu.core_type = #tpu.core_type<tc>, window_params = [{transform_indices = @transform_0, window_bounds = array<i64: 2, 256>}, {pipeline_mode = #tpu.pipeline_mode<synchronous>, transform_indices = @transform_1, window_bounds = array<i64: 128, 2>}, {pipeline_mode = #tpu.pipeline_mode<synchronous>, transform_indices = @transform_2, window_bounds = array<i64: 128, 1>}, {pipeline_mode = #tpu.pipeline_mode<synchronous>, transform_indices = @transform_3, window_bounds = array<i64: 128, 128>}, {pipeline_mode = #tpu.pipeline_mode<synchronous>, transform_indices = @transform_4, window_bounds = array<i64: 128, 1>}, {pipeline_mode = #tpu.pipeline_mode<synchronous>, transform_indices = @transform_5, window_bounds = array<i64: 1, 128>}, {pipeline_mode = #tpu.pipeline_mode<synchronous>, transform_indices = @transform_6, window_bounds = array<i64: 1, 1>}, {transform_indices = @transform_7, window_bounds = array<i64: 1, 256>}]} {
    %c0 = arith.constant 0 : index
    %c0_0 = arith.constant 0 : index
    %0 = vector.load %arg1[%c0, %c0_0] : memref<2x256xf32, #tpu.memory_space<vmem>>, vector<1x256xf32>
    %c1 = arith.constant 1 : index
    %c0_1 = arith.constant 0 : index
    %1 = vector.load %arg1[%c1, %c0_1] : memref<2x256xf32, #tpu.memory_space<vmem>>, vector<1x256xf32>
    %c0_2 = arith.constant 0 : index
    %c0_3 = arith.constant 0 : index
    %2 = vector.load %arg2[%c0_2, %c0_3] : memref<128x2xf32, #tpu.memory_space<vmem>>, vector<128x2xf32>
    %3 = vector.extract_strided_slice %2 {offsets = [0, 0], sizes = [128, 1], strides = [1, 1]} : vector<128x2xf32> to vector<128x1xf32>
    %4 = vector.broadcast %3 : vector<128x1xf32> to vector<128x256xf32>
    %5 = vector.broadcast %0 : vector<1x256xf32> to vector<128x256xf32>
    %6 = arith.mulf %4, %5 : vector<128x256xf32>
    %7 = vector.extract_strided_slice %2 {offsets = [0, 1], sizes = [128, 1], strides = [1, 1]} : vector<128x2xf32> to vector<128x1xf32>
    %8 = vector.broadcast %7 : vector<128x1xf32> to vector<128x256xf32>
    %9 = vector.broadcast %1 : vector<1x256xf32> to vector<128x256xf32>
    %10 = arith.mulf %8, %9 : vector<128x256xf32>
    %11 = arith.addf %6, %10 : vector<128x256xf32>
    %c0_4 = arith.constant 0 : index
    %c0_5 = arith.constant 0 : index
    %12 = vector.load %arg3[%c0_4, %c0_5] : memref<128x1xf32, #tpu.memory_space<vmem>>, vector<128x1xf32>
    %13 = vector.broadcast %12 : vector<128x1xf32> to vector<128x256xf32>
    %14 = arith.addf %11, %13 : vector<128x256xf32>
    %15 = math.tanh %14 : vector<128x256xf32>
    %c0_6 = arith.constant 0 : index
    %c0_7 = arith.constant 0 : index
    %16 = vector.load %arg4[%c0_6, %c0_7] : memref<128x128xf32, #tpu.memory_space<vmem>>, vector<128x128xf32>
    %cst = arith.constant dense<0.000000e+00> : vector<128x256xf32>
    %17 = tpu.matmul %16, %15, %cst {dimension_numbers = #tpu.dot_dimension_numbers<[1], [0], [0], [1], [0, 0, 1, 1], [], []>} : vector<128x128xf32>, vector<128x256xf32>, vector<128x256xf32> -> vector<128x256xf32>
    %c0_8 = arith.constant 0 : index
    %c0_9 = arith.constant 0 : index
    %18 = vector.load %arg5[%c0_8, %c0_9] : memref<128x1xf32, #tpu.memory_space<vmem>>, vector<128x1xf32>
    %19 = vector.broadcast %18 : vector<128x1xf32> to vector<128x256xf32>
    %20 = arith.addf %17, %19 : vector<128x256xf32>
    %21 = math.tanh %20 : vector<128x256xf32>
    %c0_10 = arith.constant 0 : index
    %c0_11 = arith.constant 0 : index
    %22 = vector.load %arg6[%c0_10, %c0_11] : memref<1x128xf32, #tpu.memory_space<vmem>>, vector<1x128xf32>
    %cst_12 = arith.constant dense<0.000000e+00> : vector<1x256xf32>
    %23 = tpu.matmul %22, %21, %cst_12 {dimension_numbers = #tpu.dot_dimension_numbers<[1], [0], [0], [1], [0, 0, 1, 1], [], []>} : vector<1x128xf32>, vector<128x256xf32>, vector<1x256xf32> -> vector<1x256xf32>
    %c0_13 = arith.constant 0 : index
    %c0_14 = arith.constant 0 : index
    %24 = vector.load %arg7[%c0_13, %c0_14] : memref<1x1xf32, #tpu.memory_space<vmem>>, vector<1x1xf32>
    %25 = vector.broadcast %24 : vector<1x1xf32> to vector<1x256xf32>
    %26 = arith.addf %23, %25 : vector<1x256xf32>
    %c0_15 = arith.constant 0 : index
    %c0_16 = arith.constant 0 : index
    %27 = vector.load %arg8[%c0_15, %c0_16] : memref<1x256xf32, #tpu.memory_space<vmem>>, vector<1x256xf32>
    tpu.vector_store %arg8[%c0_15, %c0_16], %26 {strides = array<i32>} : memref<1x256xf32, #tpu.memory_space<vmem>>, vector<1x256xf32>,
    return
  }
  func.func @transform_0(%arg0: i32) -> (i32, i32) {
    %c0_i32 = arith.constant 0 : i32
    %c0_i32_0 = arith.constant 0 : i32
    return %c0_i32, %arg0 : i32, i32
  }
  func.func @transform_1(%arg0: i32) -> (i32, i32) {
    %c0_i32 = arith.constant 0 : i32
    %c0_i32_0 = arith.constant 0 : i32
    %c0_i32_1 = arith.constant 0 : i32
    return %c0_i32, %c0_i32_0 : i32, i32
  }
  func.func @transform_2(%arg0: i32) -> (i32, i32) {
    %c0_i32 = arith.constant 0 : i32
    %c0_i32_0 = arith.constant 0 : i32
    %c0_i32_1 = arith.constant 0 : i32
    return %c0_i32, %c0_i32_0 : i32, i32
  }
  func.func @transform_3(%arg0: i32) -> (i32, i32) {
    %c0_i32 = arith.constant 0 : i32
    %c0_i32_0 = arith.constant 0 : i32
    %c0_i32_1 = arith.constant 0 : i32
    return %c0_i32, %c0_i32_0 : i32, i32
  }
  func.func @transform_4(%arg0: i32) -> (i32, i32) {
    %c0_i32 = arith.constant 0 : i32
    %c0_i32_0 = arith.constant 0 : i32
    %c0_i32_1 = arith.constant 0 : i32
    return %c0_i32, %c0_i32_0 : i32, i32
  }
  func.func @transform_5(%arg0: i32) -> (i32, i32) {
    %c0_i32 = arith.constant 0 : i32
    %c0_i32_0 = arith.constant 0 : i32
    %c0_i32_1 = arith.constant 0 : i32
    return %c0_i32, %c0_i32_0 : i32, i32
  }
  func.func @transform_6(%arg0: i32) -> (i32, i32) {
    %c0_i32 = arith.constant 0 : i32
    %c0_i32_0 = arith.constant 0 : i32
    %c0_i32_1 = arith.constant 0 : i32
    return %c0_i32, %c0_i32_0 : i32, i32
  }
  func.func @transform_7(%arg0: i32) -> (i32, i32) {
    %c0_i32 = arith.constant 0 : i32
    %c0_i32_0 = arith.constant 0 : i32
    return %c0_i32, %arg0 : i32, i32
  }
}

</mosaic_0001>

<llo_original>
// kernel: tpu_custom_call.1
$region0: #{tpu_custom_call.1}
  #allocation0 [shape = 'u32[]', space=smem, size = 0x4, offset = 0x4, fixed_abs, tag = 'smem constant byte address 0x4 - core index']
  #allocation1 [shape = 'u32[144,128]{1,0:T(1,128)}', space=vmem, size = 0x12000, scoped, tag = 'internal scratch']
  #allocation2 [shape = 'f32[1,1]{1,0:T(1,128)S(1)}', space=vmem, size = 0x200, scoped, tag = 'scoped memory for tpu_custom_call.1']
  %s0 = inlined_call_operand.vmem [shape: f32[2,512], index: 0, kind: input, shape index: {}]
  %s1 = inlined_call_operand.vmem [shape: f32[128,2], index: 1, kind: input, shape index: {}]
  %s2 = inlined_call_operand.vmem [shape: f32[128,1], index: 2, kind: input, shape index: {}]
  %s3 = inlined_call_operand.vmem [shape: f32[128,128], index: 3, kind: input, shape index: {}]
  %s4 = inlined_call_operand.vmem [shape: f32[128,1], index: 4, kind: input, shape index: {}]
  %s5 = inlined_call_operand.vmem [shape: f32[1,128], index: 5, kind: input, shape index: {}]
  %s6 = inlined_call_operand.<no memory space> [shape: f32[1,1], index: 6, kind: input, shape index: {}]
  %s7 = inlined_call_operand.hbm [shape: f32[1,512], index: 7, kind: output, shape index: {}]
  %s8 = sld [smem:[#allocation0]]
  $region61: #{tpu_custom_call.1} parent=0
    _
  %s10 = ssub.s32 1, %s8
  %s11 = scalar_select 0, %s10, %s8
  %v12 = vstv %s6
  %13 = vst [vmem:[#allocation2] sm:$0x1] %v12
  $region1: #{tpu_custom_call.1} parent=0
    #allocation3 [shape = 'u8[2048]{0}', space=vmem, size = 0x800, scoped, tag = 'output window, operand 0']
    #allocation4 [shape = 's32[2]{0}', space=sflag, size = 0x8, scoped, tag = 'scoped memory for tpu_custom_call.1']
    %14 = vsyncpa [#allocation4], 0
    %s15 = scalar_lea.sflag [#allocation4], 1
    %16 = vsyncpa %s15, 0
    loop: start=0, step=1, limit=4
    $region2: #{tpu_custom_call.1} parent=1 // loop_pre_header
      _
    $region3: #{tpu_custom_call.1} parent=1 // loop_header
      %s18 = sphi 0, %s22
      %p19 = scmp.ge.s32.totalorder %s18, 4
      %s28 = sphi 0, %s30
      %s31 = sphi 0, %s28
      %s32 = sphi 0, %s31
      %s48 = sphi 0, %s32
      %s52 = sphi 0, %s52
      %s54 = sphi 0, %s52
      %s55 = sphi 0, %s54
      %s69 = sphi 0, %s55
      %s73 = sphi 0, %s73
      %s75 = sphi 0, %s73
      %s76 = sphi 0, %s75
      %s90 = sphi 0, %s76
      %s94 = sphi 0, %s94
      %s96 = sphi 0, %s94
      %s97 = sphi 0, %s96
      %s111 = sphi 0, %s97
      %s115 = sphi 0, %s115
      %s117 = sphi 0, %s115
      %s118 = sphi 0, %s117
      %s132 = sphi 0, %s118
      %s136 = sphi 0, %s136
      %s138 = sphi 0, %s136
      %s139 = sphi 0, %s138
      %s153 = sphi 0, %s139
      %s157 = sphi 0, %s157
      %s159 = sphi 0, %s157
      %s160 = sphi 0, %s159
      %s174 = sphi 0, %s160
      %s180 = sphi 0, %s182
      %s183 = sphi 0, %s180
      %s184 = sphi 0, %s183
      %s200 = sphi 0, %s184
    $region4: #{tpu_custom_call.1} parent=1 // loop_header_branch
      %21 = sbr.rel (%p19) target = $region8
    $region5: #{tpu_custom_call.1} parent=1 // loop_body
      %s23 = ssub.s32 %s18, 1
      %s24 = ssub.s32 %s18, 2
      %s25 = sadd.s32 %s18, 1
      %s26 = ssub.s32 %s18, %s25
      %p27 = scmp.eq.s32.totalorder %s26, 0
      %s29 = sadd.s32 %s28, 1
      %s30 = scalar_select %p27, %s28, %s29
      %p33 = pneg %p27
      %p34 = scmp.eq.s32.totalorder %s18, 1
      %p35 = por %p33, %p34
      %p36 = scmp.ne.s32.totalorder %s28, %s31
      %p37 = scmp.eq.s32.totalorder %s18, 0
      %p38 = por %p36, %p37
      %p39 = scmp.ne.s32.totalorder %s28, %s31
      %p40 = scmp.eq.s32.totalorder %s23, 1
      %p41 = por %p39, %p40
      %p42 = scmp.ne.s32.totalorder %s31, %s32
      %p43 = scmp.eq.s32.totalorder %s23, 0
      %p44 = por %p42, %p43
      %p45 = scmp.ne.s32.totalorder %s31, %s32
      %p46 = scmp.eq.s32.totalorder %s24, 1
      %p47 = por %p45, %p46
      %p49 = scmp.ne.s32.totalorder %s32, %s48
      %p50 = scmp.eq.s32.totalorder %s24, 0
      %p51 = por %p49, %p50
      %s53 = sadd.s32 %s52, 1
      %p56 = scmp.eq.s32.totalorder %s18, 1
      %p57 = scmp.ne.s32.totalorder %s52, %s54
      %p58 = scmp.eq.s32.totalorder %s18, 0
      %p59 = por %p57, %p58
      %p60 = scmp.ne.s32.totalorder %s52, %s54
      %p61 = scmp.eq.s32.totalorder %s23, 1
      %p62 = por %p60, %p61
      %p63 = scmp.ne.s32.totalorder %s54, %s55
      %p64 = scmp.eq.s32.totalorder %s23, 0
      %p65 = por %p63, %p64
      %p66 = scmp.ne.s32.totalorder %s54, %s55
      %p67 = scmp.eq.s32.totalorder %s24, 1
      %p68 = por %p66, %p67
      %p70 = scmp.ne.s32.totalorder %s55, %s69
      %p71 = scmp.eq.s32.totalorder %s24, 0
      %p72 = por %p70, %p71
      %s74 = sadd.s32 %s73, 1
      %p77 = scmp.eq.s32.totalorder %s18, 1
      %p78 = scmp.ne.s32.totalorder %s73, %s75
      %p79 = scmp.eq.s32.totalorder %s18, 0
      %p80 = por %p78, %p79
      %p81 = scmp.ne.s32.totalorder %s73, %s75
      %p82 = scmp.eq.s32.totalorder %s23, 1
      %p83 = por %p81, %p82
      %p84 = scmp.ne.s32.totalorder %s75, %s76
      %p85 = scmp.eq.s32.totalorder %s23, 0
      %p86 = por %p84, %p85
      %p87 = scmp.ne.s32.totalorder %s75, %s76
      %p88 = scmp.eq.s32.totalorder %s24, 1
      %p89 = por %p87, %p88
      %p91 = scmp.ne.s32.totalorder %s76, %s90
      %p92 = scmp.eq.s32.totalorder %s24, 0
      %p93 = por %p91, %p92
      %s95 = sadd.s32 %s94, 1
      %p98 = scmp.eq.s32.totalorder %s18, 1
      %p99 = scmp.ne.s32.totalorder %s94, %s96
      %p100 = scmp.eq.s32.totalorder %s18, 0
      %p101 = por %p99, %p100
      %p102 = scmp.ne.s32.totalorder %s94, %s96
      %p103 = scmp.eq.s32.totalorder %s23, 1
      %p104 = por %p102, %p103
      %p105 = scmp.ne.s32.totalorder %s96, %s97
      %p106 = scmp.eq.s32.totalorder %s23, 0
      %p107 = por %p105, %p106
      %p108 = scmp.ne.s32.totalorder %s96, %s97
      %p109 = scmp.eq.s32.totalorder %s24, 1
      %p110 = por %p108, %p109
      %p112 = scmp.ne.s32.totalorder %s97, %s111
      %p113 = scmp.eq.s32.totalorder %s24, 0
      %p114 = por %p112, %p113
      %s116 = sadd.s32 %s115, 1
      %p119 = scmp.eq.s32.totalorder %s18, 1
      %p120 = scmp.ne.s32.totalorder %s115, %s117
      %p121 = scmp.eq.s32.totalorder %s18, 0
      %p122 = por %p120, %p121
      %p123 = scmp.ne.s32.totalorder %s115, %s117
      %p124 = scmp.eq.s32.totalorder %s23, 1
      %p125 = por %p123, %p124
      %p126 = scmp.ne.s32.totalorder %s117, %s118
      %p127 = scmp.eq.s32.totalorder %s23, 0
      %p128 = por %p126, %p127
      %p129 = scmp.ne.s32.totalorder %s117, %s118
      %p130 = scmp.eq.s32.totalorder %s24, 1
      %p131 = por %p129, %p130
      %p133 = scmp.ne.s32.totalorder %s118, %s132
      %p134 = scmp.eq.s32.totalorder %s24, 0
      %p135 = por %p133, %p134
      %s137 = sadd.s32 %s136, 1
      %p140 = scmp.eq.s32.totalorder %s18, 1
      %p141 = scmp.ne.s32.totalorder %s136, %s138
      %p142 = scmp.eq.s32.totalorder %s18, 0
      %p143 = por %p141, %p142
      %p144 = scmp.ne.s32.totalorder %s136, %s138
      %p145 = scmp.eq.s32.totalorder %s23, 1
      %p146 = por %p144, %p145
      %p147 = scmp.ne.s32.totalorder %s138, %s139
      %p148 = scmp.eq.s32.totalorder %s23, 0
      %p149 = por %p147, %p148
      %p150 = scmp.ne.s32.totalorder %s138, %s139
      %p151 = scmp.eq.s32.totalorder %s24, 1
      %p152 = por %p150, %p151
      %p154 = scmp.ne.s32.totalorder %s139, %s153
      %p155 = scmp.eq.s32.totalorder %s24, 0
      %p156 = por %p154, %p155
      %s158 = sadd.s32 %s157, 1
      %p161 = scmp.eq.s32.totalorder %s18, 1
      %p162 = scmp.ne.s32.totalorder %s157, %s159
      %p163 = scmp.eq.s32.totalorder %s18, 0
      %p164 = por %p162, %p163
      %p165 = scmp.ne.s32.totalorder %s157, %s159
      %p166 = scmp.eq.s32.totalorder %s23, 1
      %p167 = por %p165, %p166
      %p168 = scmp.ne.s32.totalorder %s159, %s160
      %p169 = scmp.eq.s32.totalorder %s23, 0
      %p170 = por %p168, %p169
      %p171 = scmp.ne.s32.totalorder %s159, %s160
      %p172 = scmp.eq.s32.totalorder %s24, 1
      %p173 = por %p171, %p172
      %p175 = scmp.ne.s32.totalorder %s160, %s174
      %p176 = scmp.eq.s32.totalorder %s24, 0
      %p177 = por %p175, %p176
      %s178 = ssub.s32 %s18, %s25
      %p179 = scmp.eq.s32.totalorder %s178, 0
      %s181 = sadd.s32 %s180, 1
      %s182 = scalar_select %p179, %s180, %s181
      %p185 = pneg %p179
      %p186 = scmp.eq.s32.totalorder %s18, 1
      %p187 = por %p185, %p186
      %p188 = scmp.ne.s32.totalorder %s180, %s183
      %p189 = scmp.eq.s32.totalorder %s18, 0
      %p190 = por %p188, %p189
      %p191 = scmp.ne.s32.totalorder %s180, %s183
      %p192 = scmp.eq.s32.totalorder %s23, 1
      %p193 = por %p191, %p192
      %p194 = scmp.ne.s32.totalorder %s183, %s184
      %p195 = scmp.eq.s32.totalorder %s23, 0
      %p196 = por %p194, %p195
      %p197 = scmp.ne.s32.totalorder %s183, %s184
      %p198 = scmp.eq.s32.totalorder %s24, 1
      %p199 = por %p197, %p198
      %p201 = scmp.ne.s32.totalorder %s184, %s200
      %p202 = scmp.eq.s32.totalorder %s24, 0
      %p203 = por %p201, %p202
      %p204 = scmp.le.s32.totalorder 1, %s18
      %p205 = scmp.lt.s32.totalorder %s18, 3
      %p206 = pnand %p204, %p205
      %p207 = pneg %p206
      // Predicated region
      $region9: #{tpu_custom_call.1} parent=5 // pred_check
        _
      $region10: #{tpu_custom_call.1} parent=5 // pred_check_branch
        %209 = sbr.rel (%p206) target = $region12
      $region11: #{tpu_custom_call.1} parent=5 // pred_region
        %s210 = ssub.s32 %s18, 1
        // Predicated region
        $region13: #{tpu_custom_call.1} parent=11 // pred_check
          %p211 = pneg %p65
        $region14: #{tpu_custom_call.1} parent=11 // pred_check_branch
          %213 = sbr.rel (%p211) target = $region16
        $region15: #{tpu_custom_call.1} parent=11 // pred_region
          _
        $region16: #{tpu_custom_call.1} parent=11 // pred_fallthru
          _
        // Predicated region
        $region17: #{tpu_custom_call.1} parent=11 // pred_check
          %p214 = pneg %p86
        $region18: #{tpu_custom_call.1} parent=11 // pred_check_branch
          %216 = sbr.rel (%p214) target = $region20
        $region19: #{tpu_custom_call.1} parent=11 // pred_region
          _
        $region20: #{tpu_custom_call.1} parent=11 // pred_fallthru
          _
        // Predicated region
        $region21: #{tpu_custom_call.1} parent=11 // pred_check
          %p217 = pneg %p107
        $region22: #{tpu_custom_call.1} parent=11 // pred_check_branch
          %219 = sbr.rel (%p217) target = $region24
        $region23: #{tpu_custom_call.1} parent=11 // pred_region
          _
        $region24: #{tpu_custom_call.1} parent=11 // pred_fallthru
          _
        // Predicated region
        $region25: #{tpu_custom_call.1} parent=11 // pred_check
          %p220 = pneg %p128
        $region26: #{tpu_custom_call.1} parent=11 // pred_check_branch
          %222 = sbr.rel (%p220) target = $region28
        $region27: #{tpu_custom_call.1} parent=11 // pred_region
          _
        $region28: #{tpu_custom_call.1} parent=11 // pred_fallthru
          _
        // Predicated region
        $region29: #{tpu_custom_call.1} parent=11 // pred_check
          %p223 = pneg %p149
        $region30: #{tpu_custom_call.1} parent=11 // pred_check_branch
          %225 = sbr.rel (%p223) target = $region32
        $region31: #{tpu_custom_call.1} parent=11 // pred_region
          _
        $region32: #{tpu_custom_call.1} parent=11 // pred_fallthru
          _
        // Predicated region
        $region33: #{tpu_custom_call.1} parent=11 // pred_check
          %p226 = pneg %p170
        $region34: #{tpu_custom_call.1} parent=11 // pred_check_branch
          %228 = sbr.rel (%p226) target = $region36
        $region35: #{tpu_custom_call.1} parent=11 // pred_region
          _
        $region36: #{tpu_custom_call.1} parent=11 // pred_fallthru
          _
      $region12: #{tpu_custom_call.1} parent=5 // pred_fallthru
        _
      %p229 = scmp.lt.s32.totalorder %s18, 2
      // Predicated region
      $region37: #{tpu_custom_call.1} parent=5 // pred_check
        %p230 = pneg %p229
      $region38: #{tpu_custom_call.1} parent=5 // pred_check_branch
        %232 = sbr.rel (%p230) target = $region40
      $region39: #{tpu_custom_call.1} parent=5 // pred_region
        // Predicated region
        $region41: #{tpu_custom_call.1} parent=39 // pred_check
          %p233 = pneg %p38
        $region42: #{tpu_custom_call.1} parent=39 // pred_check_branch
          %235 = sbr.rel (%p233) target = $region44
        $region43: #{tpu_custom_call.1} parent=39 // pred_region
          %s236 = smul.u32 2, %s18
          %p237 = scmp.lt.s32.totalorder %s236, 3
          %s238 = scalar_select %p237, %s236, 3
          %s239 = smul.addr %s238, 2
          %s240 = scalar_lea.vmem %s0, %s239
          %s241 = smul.u32 2, %s18
        $region44: #{tpu_custom_call.1} parent=39 // pred_fallthru
          _
      $region40: #{tpu_custom_call.1} parent=5 // pred_fallthru
        _
      %p242 = scmp.le.s32.totalorder 1, %s18
      %p243 = scmp.lt.s32.totalorder %s18, 3
      %p244 = pnand %p242, %p243
      %p245 = pneg %p244
      // Predicated region
      $region45: #{tpu_custom_call.1} parent=5 // pred_check
        _
      $region46: #{tpu_custom_call.1} parent=5 // pred_check_branch
        %247 = sbr.rel (%p244) target = $region48
      $region47: #{tpu_custom_call.1} parent=5 // pred_region
        %s248 = ssub.s32 %s18, 1
        %s249 = smul.u32 2, %s23
        %p250 = scmp.lt.s32.totalorder %s249, 3
        %s251 = scalar_select %p250, %s249, 3
        %s252 = smul.addr %s251, 2
        %s253 = scalar_lea.vmem %s0, %s252
        %p254 = pneg %p44
        %p255 = pneg %p41
        %p256 = pneg %p65
        %p257 = pneg %p62
        %p258 = pneg %p86
        %p259 = pneg %p83
        %p260 = pneg %p107
        %p261 = pneg %p104
        %p262 = pneg %p128
        %p263 = pneg %p125
        %p264 = pneg %p149
        %p265 = pneg %p146
        %p266 = pneg %p170
        %p267 = pneg %p167
        %p268 = pneg %p196
        %p269 = pneg %p193
        %s270 = sand.u32 %s183, 1
        %s271 = scalar_lea.sflag [#allocation4], %s270
        %s272 = sand.u32 %s183, 1
        %s273 = smul.addr %s272, 2
        %s274 = scalar_lea.vmem [#allocation3], %s273
        %s275 = smul.u32 2, %s23
        %p276 = scmp.lt.s32.totalorder %s275, 3
        %s277 = scalar_select %p276, %s275, 3
        %s278 = smul.addr %s277, 2
        %s279 = scalar_lea.vmem %s0, %s278
        %s280 = smul.u32 2, %s23
        %s281 = smul.u32 2, %s23
        %v282 = vld [vmem:[%s279] ss:$2 sm:$0x3]
        %s283 = scalar_lea.vmem %s279, 1
        %v284 = vld [vmem:[%s283] ss:$2 sm:$0x3]
        %v285 = vld [vmem:[%s1] sm:$0xff]
        %v286 = vld [vmem:[%s1 + $0x8] sm:$0xff]
        %v287 = vld [vmem:[%s1 + $0x10] sm:$0xff]
        %v288 = vld [vmem:[%s1 + $0x18] sm:$0xff]
        %v289 = vld [vmem:[%s1 + $0x20] sm:$0xff]
        %v290 = vld [vmem:[%s1 + $0x28] sm:$0xff]
        %v291 = vld [vmem:[%s1 + $0x30] sm:$0xff]
        %v292 = vld [vmem:[%s1 + $0x38] sm:$0xff]
        %v293 = vld [vmem:[%s1 + $0x40] sm:$0xff]
        %v294 = vld [vmem:[%s1 + $0x48] sm:$0xff]
        %v295 = vld [vmem:[%s1 + $0x50] sm:$0xff]
        %v296 = vld [vmem:[%s1 + $0x58] sm:$0xff]
        %v297 = vld [vmem:[%s1 + $0x60] sm:$0xff]
        %v298 = vld [vmem:[%s1 + $0x68] sm:$0xff]
        %v299 = vld [vmem:[%s1 + $0x70] sm:$0xff]
        %v300 = vld [vmem:[%s1 + $0x78] sm:$0xff]
        %302 = vset.pattern.permute.xlu0 0
        %303 = vperm.xlu0 %302, %v285
        %v304 = vpop.permute.xlu0 %303
        %307 = vset.pattern.permute.xlu0 0
        %308 = vperm.xlu0 %307, %v286
        %v309 = vpop.permute.xlu0 %308
        %312 = vset.pattern.permute.xlu0 0
        %313 = vperm.xlu0 %312, %v287
        %v314 = vpop.permute.xlu0 %313
        %317 = vset.pattern.permute.xlu0 0
        %318 = vperm.xlu0 %317, %v288
        %v319 = vpop.permute.xlu0 %318
        %322 = vset.pattern.permute.xlu0 0
        %323 = vperm.xlu0 %322, %v289
        %v324 = vpop.permute.xlu0 %323
        %327 = vset.pattern.permute.xlu0 0
        %328 = vperm.xlu0 %327, %v290
        %v329 = vpop.permute.xlu0 %328
        %332 = vset.pattern.permute.xlu0 0
        %333 = vperm.xlu0 %332, %v291
        %v334 = vpop.permute.xlu0 %333
        %337 = vset.pattern.permute.xlu0 0
        %338 = vperm.xlu0 %337, %v292
        %v339 = vpop.permute.xlu0 %338
        %342 = vset.pattern.permute.xlu0 0
        %343 = vperm.xlu0 %342, %v293
        %v344 = vpop.permute.xlu0 %343
        %347 = vset.pattern.permute.xlu0 0
        %348 = vperm.xlu0 %347, %v294
        %v349 = vpop.permute.xlu0 %348
        %352 = vset.pattern.permute.xlu0 0
        %353 = vperm.xlu0 %352, %v295
        %v354 = vpop.permute.xlu0 %353
        %357 = vset.pattern.permute.xlu0 0
        %358 = vperm.xlu0 %357, %v296
        %v359 = vpop.permute.xlu0 %358
        %362 = vset.pattern.permute.xlu0 0
        %363 = vperm.xlu0 %362, %v297
        %v364 = vpop.permute.xlu0 %363
        %367 = vset.pattern.permute.xlu0 0
        %368 = vperm.xlu0 %367, %v298
        %v369 = vpop.permute.xlu0 %368
        %372 = vset.pattern.permute.xlu0 0
        %373 = vperm.xlu0 %372, %v299
        %v374 = vpop.permute.xlu0 %373
        %377 = vset.pattern.permute.xlu0 0
        %378 = vperm.xlu0 %377, %v300
        %v379 = vpop.permute.xlu0 %378
        %v382 = vlaneseq
        %v383 = vshrl.u32 %v382, 7
        %v384 = vsub.s32 0, %v383
        %v385 = vrot.slane %v282, %v384
        %v386 = vlaneseq
        %v387 = vshrl.u32 %v386, 7
        %v388 = vsub.s32 1, %v387
        %v389 = vrot.slane %v282, %v388
        %v392 = vmul.f32 %v304, %v385
        %v393 = vmul.f32 %v304, %v389
        %v394 = vmul.f32 %v309, %v385
        %v395 = vmul.f32 %v309, %v389
        %v396 = vmul.f32 %v314, %v385
        %v397 = vmul.f32 %v314, %v389
        %v398 = vmul.f32 %v319, %v385
        %v399 = vmul.f32 %v319, %v389
        %v400 = vmul.f32 %v324, %v385
        %v401 = vmul.f32 %v324, %v389
        %v402 = vmul.f32 %v329, %v385
        %v403 = vmul.f32 %v329, %v389
        %v404 = vmul.f32 %v334, %v385
        %v405 = vmul.f32 %v334, %v389
        %v406 = vmul.f32 %v339, %v385
        %v407 = vmul.f32 %v339, %v389
        %v408 = vmul.f32 %v344, %v385
        %v409 = vmul.f32 %v344, %v389
        %v410 = vmul.f32 %v349, %v385
        %v411 = vmul.f32 %v349, %v389
        %v412 = vmul.f32 %v354, %v385
        %v413 = vmul.f32 %v354, %v389
        %v414 = vmul.f32 %v359, %v385
        %v415 = vmul.f32 %v359, %v389
        %v416 = vmul.f32 %v364, %v385
        %v417 = vmul.f32 %v364, %v389
        %v418 = vmul.f32 %v369, %v385
        %v419 = vmul.f32 %v369, %v389
        %v420 = vmul.f32 %v374, %v385
        %v421 = vmul.f32 %v374, %v389
        %v422 = vmul.f32 %v379, %v385
        %v423 = vmul.f32 %v379, %v389
        %424 = vset.pattern.permute.xlu0 1
        %425 = vperm.xlu0 %424, %v285
        %v426 = vpop.permute.xlu0 %425
        %428 = vset.pattern.permute.xlu0 1
        %429 = vperm.xlu0 %428, %v286
        %v430 = vpop.permute.xlu0 %429
        %432 = vset.pattern.permute.xlu0 1
        %433 = vperm.xlu0 %432, %v287
        %v434 = vpop.permute.xlu0 %433
        %436 = vset.pattern.permute.xlu0 1
        %437 = vperm.xlu0 %436, %v288
        %v438 = vpop.permute.xlu0 %437
        %440 = vset.pattern.permute.xlu0 1
        %441 = vperm.xlu0 %440, %v289
        %v442 = vpop.permute.xlu0 %441
        %444 = vset.pattern.permute.xlu0 1
        %445 = vperm.xlu0 %444, %v290
        %v446 = vpop.permute.xlu0 %445
        %448 = vset.pattern.permute.xlu0 1
        %449 = vperm.xlu0 %448, %v291
        %v450 = vpop.permute.xlu0 %449
        %452 = vset.pattern.permute.xlu0 1
        %453 = vperm.xlu0 %452, %v292
        %v454 = vpop.permute.xlu0 %453
        %456 = vset.pattern.permute.xlu0 1
        %457 = vperm.xlu0 %456, %v293
        %v458 = vpop.permute.xlu0 %457
        %460 = vset.pattern.permute.xlu0 1
        %461 = vperm.xlu0 %460, %v294
        %v462 = vpop.permute.xlu0 %461
        %464 = vset.pattern.permute.xlu0 1
        %465 = vperm.xlu0 %464, %v295
        %v466 = vpop.permute.xlu0 %465
        %468 = vset.pattern.permute.xlu0 1
        %469 = vperm.xlu0 %468, %v296
        %v470 = vpop.permute.xlu0 %469
        %472 = vset.pattern.permute.xlu0 1
        %473 = vperm.xlu0 %472, %v297
        %v474 = vpop.permute.xlu0 %473
        %476 = vset.pattern.permute.xlu0 1
        %477 = vperm.xlu0 %476, %v298
        %v478 = vpop.permute.xlu0 %477
        %480 = vset.pattern.permute.xlu0 1
        %481 = vperm.xlu0 %480, %v299
        %v482 = vpop.permute.xlu0 %481
        %484 = vset.pattern.permute.xlu0 1
        %485 = vperm.xlu0 %484, %v300
        %v486 = vpop.permute.xlu0 %485
        %v489 = vlaneseq
        %v490 = vshrl.u32 %v489, 7
        %v491 = vsub.s32 0, %v490
        %v492 = vrot.slane %v284, %v491
        %v493 = vlaneseq
        %v494 = vshrl.u32 %v493, 7
        %v495 = vsub.s32 1, %v494
        %v496 = vrot.slane %v284, %v495
        %v499 = vmul.f32 %v426, %v492
        %v500 = vmul.f32 %v426, %v496
        %v501 = vmul.f32 %v430, %v492
        %v502 = vmul.f32 %v430, %v496
        %v503 = vmul.f32 %v434, %v492
        %v504 = vmul.f32 %v434, %v496
        %v505 = vmul.f32 %v438, %v492
        %v506 = vmul.f32 %v438, %v496
        %v507 = vmul.f32 %v442, %v492
        %v508 = vmul.f32 %v442, %v496
        %v509 = vmul.f32 %v446, %v492
        %v510 = vmul.f32 %v446, %v496
        %v511 = vmul.f32 %v450, %v492
        %v512 = vmul.f32 %v450, %v496
        %v513 = vmul.f32 %v454, %v492
        %v514 = vmul.f32 %v454, %v496
        %v515 = vmul.f32 %v458, %v492
        %v516 = vmul.f32 %v458, %v496
        %v517 = vmul.f32 %v462, %v492
        %v518 = vmul.f32 %v462, %v496
        %v519 = vmul.f32 %v466, %v492
        %v520 = vmul.f32 %v466, %v496
        %v521 = vmul.f32 %v470, %v492
        %v522 = vmul.f32 %v470, %v496
        %v523 = vmul.f32 %v474, %v492
        %v524 = vmul.f32 %v474, %v496
        %v525 = vmul.f32 %v478, %v492
        %v526 = vmul.f32 %v478, %v496
        %v527 = vmul.f32 %v482, %v492
        %v528 = vmul.f32 %v482, %v496
        %v529 = vmul.f32 %v486, %v492
        %v530 = vmul.f32 %v486, %v496
        %v531 = vadd.f32 %v392, %v499
        %v532 = vadd.f32 %v393, %v500
        %v533 = vadd.f32 %v394, %v501
        %v534 = vadd.f32 %v395, %v502
        %v535 = vadd.f32 %v396, %v503
        %v536 = vadd.f32 %v397, %v504
        %v537 = vadd.f32 %v398, %v505
        %v538 = vadd.f32 %v399, %v506
        %v539 = vadd.f32 %v400, %v507
        %v540 = vadd.f32 %v401, %v508
        %v541 = vadd.f32 %v402, %v509
        %v542 = vadd.f32 %v403, %v510
        %v543 = vadd.f32 %v404, %v511
        %v544 = vadd.f32 %v405, %v512
        %v545 = vadd.f32 %v406, %v513
        %v546 = vadd.f32 %v407, %v514
        %v547 = vadd.f32 %v408, %v515
        %v548 = vadd.f32 %v409, %v516
        %v549 = vadd.f32 %v410, %v517
        %v550 = vadd.f32 %v411, %v518
        %v551 = vadd.f32 %v412, %v519
        %v552 = vadd.f32 %v413, %v520
        %v553 = vadd.f32 %v414, %v521
        %v554 = vadd.f32 %v415, %v522
        %v555 = vadd.f32 %v416, %v523
        %v556 = vadd.f32 %v417, %v524
        %v557 = vadd.f32 %v418, %v525
        %v558 = vadd.f32 %v419, %v526
        %v559 = vadd.f32 %v420, %v527
        %v560 = vadd.f32 %v421, %v528
        %v561 = vadd.f32 %v422, %v529
        %v562 = vadd.f32 %v423, %v530
        %v563 = vld [vmem:[%s2] sm:$0xff]
        %v564 = vld [vmem:[%s2 + $0x8] sm:$0xff]
        %v565 = vld [vmem:[%s2 + $0x10] sm:$0xff]
        %v566 = vld [vmem:[%s2 + $0x18] sm:$0xff]
        %v567 = vld [vmem:[%s2 + $0x20] sm:$0xff]
        %v568 = vld [vmem:[%s2 + $0x28] sm:$0xff]
        %v569 = vld [vmem:[%s2 + $0x30] sm:$0xff]
        %v570 = vld [vmem:[%s2 + $0x38] sm:$0xff]
        %v571 = vld [vmem:[%s2 + $0x40] sm:$0xff]
        %v572 = vld [vmem:[%s2 + $0x48] sm:$0xff]
        %v573 = vld [vmem:[%s2 + $0x50] sm:$0xff]
        %v574 = vld [vmem:[%s2 + $0x58] sm:$0xff]
        %v575 = vld [vmem:[%s2 + $0x60] sm:$0xff]
        %v576 = vld [vmem:[%s2 + $0x68] sm:$0xff]
        %v577 = vld [vmem:[%s2 + $0x70] sm:$0xff]
        %v578 = vld [vmem:[%s2 + $0x78] sm:$0xff]
        %580 = vset.pattern.permute.xlu0 0
        %581 = vperm.xlu0 %580, %v563
        %v582 = vpop.permute.xlu0 %581
        %585 = vset.pattern.permute.xlu0 0
        %586 = vperm.xlu0 %585, %v564
        %v587 = vpop.permute.xlu0 %586
        %590 = vset.pattern.permute.xlu0 0
        %591 = vperm.xlu0 %590, %v565
        %v592 = vpop.permute.xlu0 %591
        %595 = vset.pattern.permute.xlu0 0
        %596 = vperm.xlu0 %595, %v566
        %v597 = vpop.permute.xlu0 %596
        %600 = vset.pattern.permute.xlu0 0
        %601 = vperm.xlu0 %600, %v567
        %v602 = vpop.permute.xlu0 %601
        %605 = vset.pattern.permute.xlu0 0
        %606 = vperm.xlu0 %605, %v568
        %v607 = vpop.permute.xlu0 %606
        %610 = vset.pattern.permute.xlu0 0
        %611 = vperm.xlu0 %610, %v569
        %v612 = vpop.permute.xlu0 %611
        %615 = vset.pattern.permute.xlu0 0
        %616 = vperm.xlu0 %615, %v570
        %v617 = vpop.permute.xlu0 %616
        %620 = vset.pattern.permute.xlu0 0
        %621 = vperm.xlu0 %620, %v571
        %v622 = vpop.permute.xlu0 %621
        %625 = vset.pattern.permute.xlu0 0
        %626 = vperm.xlu0 %625, %v572
        %v627 = vpop.permute.xlu0 %626
        %630 = vset.pattern.permute.xlu0 0
        %631 = vperm.xlu0 %630, %v573
        %v632 = vpop.permute.xlu0 %631
        %635 = vset.pattern.permute.xlu0 0
        %636 = vperm.xlu0 %635, %v574
        %v637 = vpop.permute.xlu0 %636
        %640 = vset.pattern.permute.xlu0 0
        %641 = vperm.xlu0 %640, %v575
        %v642 = vpop.permute.xlu0 %641
        %645 = vset.pattern.permute.xlu0 0
        %646 = vperm.xlu0 %645, %v576
        %v647 = vpop.permute.xlu0 %646
        %650 = vset.pattern.permute.xlu0 0
        %651 = vperm.xlu0 %650, %v577
        %v652 = vpop.permute.xlu0 %651
        %655 = vset.pattern.permute.xlu0 0
        %656 = vperm.xlu0 %655, %v578
        %v657 = vpop.permute.xlu0 %656
        %v659 = vadd.f32 %v531, %v582
        %v660 = vadd.f32 %v532, %v582
        %v661 = vadd.f32 %v533, %v587
        %v662 = vadd.f32 %v534, %v587
        %v663 = vadd.f32 %v535, %v592
        %v664 = vadd.f32 %v536, %v592
        %v665 = vadd.f32 %v537, %v597
        %v666 = vadd.f32 %v538, %v597
        %v667 = vadd.f32 %v539, %v602
        %v668 = vadd.f32 %v540, %v602
        %v669 = vadd.f32 %v541, %v607
        %v670 = vadd.f32 %v542, %v607
        %v671 = vadd.f32 %v543, %v612
        %v672 = vadd.f32 %v544, %v612
        %v673 = vadd.f32 %v545, %v617
        %v674 = vadd.f32 %v546, %v617
        %v675 = vadd.f32 %v547, %v622
        %v676 = vadd.f32 %v548, %v622
        %v677 = vadd.f32 %v549, %v627
        %v678 = vadd.f32 %v550, %v627
        %v679 = vadd.f32 %v551, %v632
        %v680 = vadd.f32 %v552, %v632
        %v681 = vadd.f32 %v553, %v637
        %v682 = vadd.f32 %v554, %v637
        %v683 = vadd.f32 %v555, %v642
        %v684 = vadd.f32 %v556, %v642
        %v685 = vadd.f32 %v557, %v647
        %v686 = vadd.f32 %v558, %v647
        %v687 = vadd.f32 %v559, %v652
        %v688 = vadd.f32 %v560, %v652
        %v689 = vadd.f32 %v561, %v657
        %v690 = vadd.f32 %v562, %v657
        %v691 = vtanh.pop %v659
        %v692 = vtanh.pop %v660
        %v693 = vtanh.pop %v661
        %v694 = vtanh.pop %v662
        %v695 = vtanh.pop %v663
        %v696 = vtanh.pop %v664
        %v697 = vtanh.pop %v665
        %v698 = vtanh.pop %v666
        %v699 = vtanh.pop %v667
        %v700 = vtanh.pop %v668
        %v701 = vtanh.pop %v669
        %v702 = vtanh.pop %v670
        %v703 = vtanh.pop %v671
        %v704 = vtanh.pop %v672
        %v705 = vtanh.pop %v673
        %v706 = vtanh.pop %v674
        %v707 = vtanh.pop %v675
        %v708 = vtanh.pop %v676
        %v709 = vtanh.pop %v677
        %v710 = vtanh.pop %v678
        %v711 = vtanh.pop %v679
        %v712 = vtanh.pop %v680
        %v713 = vtanh.pop %v681
        %v714 = vtanh.pop %v682
        %v715 = vtanh.pop %v683
        %v716 = vtanh.pop %v684
        %v717 = vtanh.pop %v685
        %v718 = vtanh.pop %v686
        %v719 = vtanh.pop %v687
        %v720 = vtanh.pop %v688
        %v721 = vtanh.pop %v689
        %v722 = vtanh.pop %v690
        %v723 = vld [vmem:[%s3] sm:$0xff]
        %v724 = vld [vmem:[%s3 + $0x8] sm:$0xff]
        %v725 = vld [vmem:[%s3 + $0x10] sm:$0xff]
        %v726 = vld [vmem:[%s3 + $0x18] sm:$0xff]
        %v727 = vld [vmem:[%s3 + $0x20] sm:$0xff]
        %v728 = vld [vmem:[%s3 + $0x28] sm:$0xff]
        %v729 = vld [vmem:[%s3 + $0x30] sm:$0xff]
        %v730 = vld [vmem:[%s3 + $0x38] sm:$0xff]
        %v731 = vld [vmem:[%s3 + $0x40] sm:$0xff]
        %v732 = vld [vmem:[%s3 + $0x48] sm:$0xff]
        %v733 = vld [vmem:[%s3 + $0x50] sm:$0xff]
        %v734 = vld [vmem:[%s3 + $0x58] sm:$0xff]
        %v735 = vld [vmem:[%s3 + $0x60] sm:$0xff]
        %v736 = vld [vmem:[%s3 + $0x68] sm:$0xff]
        %v737 = vld [vmem:[%s3 + $0x70] sm:$0xff]
        %v738 = vld [vmem:[%s3 + $0x78] sm:$0xff]
        %v739 = vld [vmem:[%s4] sm:$0xff]
        %v740 = vld [vmem:[%s4 + $0x8] sm:$0xff]
        %v741 = vld [vmem:[%s4 + $0x10] sm:$0xff]
        %v742 = vld [vmem:[%s4 + $0x18] sm:$0xff]
        %v743 = vld [vmem:[%s4 + $0x20] sm:$0xff]
        %v744 = vld [vmem:[%s4 + $0x28] sm:$0xff]
        %v745 = vld [vmem:[%s4 + $0x30] sm:$0xff]
        %v746 = vld [vmem:[%s4 + $0x38] sm:$0xff]
        %v747 = vld [vmem:[%s4 + $0x40] sm:$0xff]
        %v748 = vld [vmem:[%s4 + $0x48] sm:$0xff]
        %v749 = vld [vmem:[%s4 + $0x50] sm:$0xff]
        %v750 = vld [vmem:[%s4 + $0x58] sm:$0xff]
        %v751 = vld [vmem:[%s4 + $0x60] sm:$0xff]
        %v752 = vld [vmem:[%s4 + $0x68] sm:$0xff]
        %v753 = vld [vmem:[%s4 + $0x70] sm:$0xff]
        %v754 = vld [vmem:[%s4 + $0x78] sm:$0xff]
        %756 = vset.pattern.permute.xlu0 0
        %757 = vperm.xlu0 %756, %v739
        %v758 = vpop.permute.xlu0 %757
        %761 = vset.pattern.permute.xlu0 0
        %762 = vperm.xlu0 %761, %v740
        %v763 = vpop.permute.xlu0 %762
        %766 = vset.pattern.permute.xlu0 0
        %767 = vperm.xlu0 %766, %v741
        %v768 = vpop.permute.xlu0 %767
        %771 = vset.pattern.permute.xlu0 0
        %772 = vperm.xlu0 %771, %v742
        %v773 = vpop.permute.xlu0 %772
        %776 = vset.pattern.permute.xlu0 0
        %777 = vperm.xlu0 %776, %v743
        %v778 = vpop.permute.xlu0 %777
        %781 = vset.pattern.permute.xlu0 0
        %782 = vperm.xlu0 %781, %v744
        %v783 = vpop.permute.xlu0 %782
        %786 = vset.pattern.permute.xlu0 0
        %787 = vperm.xlu0 %786, %v745
        %v788 = vpop.permute.xlu0 %787
        %791 = vset.pattern.permute.xlu0 0
        %792 = vperm.xlu0 %791, %v746
        %v793 = vpop.permute.xlu0 %792
        %796 = vset.pattern.permute.xlu0 0
        %797 = vperm.xlu0 %796, %v747
        %v798 = vpop.permute.xlu0 %797
        %801 = vset.pattern.permute.xlu0 0
        %802 = vperm.xlu0 %801, %v748
        %v803 = vpop.permute.xlu0 %802
        %806 = vset.pattern.permute.xlu0 0
        %807 = vperm.xlu0 %806, %v749
        %v808 = vpop.permute.xlu0 %807
        %811 = vset.pattern.permute.xlu0 0
        %812 = vperm.xlu0 %811, %v750
        %v813 = vpop.permute.xlu0 %812
        %816 = vset.pattern.permute.xlu0 0
        %817 = vperm.xlu0 %816, %v751
        %v818 = vpop.permute.xlu0 %817
        %821 = vset.pattern.permute.xlu0 0
        %822 = vperm.xlu0 %821, %v752
        %v823 = vpop.permute.xlu0 %822
        %826 = vset.pattern.permute.xlu0 0
        %827 = vperm.xlu0 %826, %v753
        %v828 = vpop.permute.xlu0 %827
        %831 = vset.pattern.permute.xlu0 0
        %832 = vperm.xlu0 %831, %v754
        %v833 = vpop.permute.xlu0 %832
        %835 = vmatprep.subr.mxu0 %v692
        %836 = vmatpush1.msra.mxu0 %v691
        %837 = vmatprep.subr.mxu0 %v694
        %838 = vmatpush1.msra.mxu0 %v693
        %839 = vmatprep.subr.mxu0 %v696
        %840 = vmatpush1.msra.mxu0 %v695
        %841 = vmatprep.subr.mxu0 %v698
        %842 = vmatpush1.msra.mxu0 %v697
        %843 = vmatprep.subr.mxu0 %v700
        %844 = vmatpush1.msra.mxu0 %v699
        %845 = vmatprep.subr.mxu0 %v702
        %846 = vmatpush1.msra.mxu0 %v701
        %847 = vmatprep.subr.mxu0 %v704
        %848 = vmatpush1.msra.mxu0 %v703
        %849 = vmatprep.subr.mxu0 %v706
        %850 = vmatpush1.msra.mxu0 %v705
        %851 = vmatprep.subr.mxu0 %v708
        %852 = vmatpush1.msra.mxu0 %v707
        %853 = vmatprep.subr.mxu0 %v710
        %854 = vmatpush1.msra.mxu0 %v709
        %855 = vmatprep.subr.mxu0 %v712
        %856 = vmatpush1.msra.mxu0 %v711
        %857 = vmatprep.subr.mxu0 %v714
        %858 = vmatpush1.msra.mxu0 %v713
        %859 = vmatprep.subr.mxu0 %v716
        %860 = vmatpush1.msra.mxu0 %v715
        %861 = vmatprep.subr.mxu0 %v718
        %862 = vmatpush1.msra.mxu0 %v717
        %863 = vmatprep.subr.mxu0 %v720
        %864 = vmatpush1.msra.mxu0 %v719
        %865 = vmatprep.subr.mxu0 %v722
        %866 = vmatpush1.msra.mxu0 %v721
        %867 = vmatprep.subr.mxu0 0.0
        %868 = vmatpush1.msra.mxu0 0.0
        %869 = vmatprep.subr.mxu0 0.0
        %870 = vmatpush1.msra.mxu0 0.0
        %871 = vmatprep.subr.mxu0 0.0
        %872 = vmatpush1.msra.mxu0 0.0
        %873 = vmatprep.subr.mxu0 0.0
        %874 = vmatpush1.msra.mxu0 0.0
        %875 = vmatprep.subr.mxu0 0.0
        %876 = vmatpush1.msra.mxu0 0.0
        %877 = vmatprep.subr.mxu0 0.0
        %878 = vmatpush1.msra.mxu0 0.0
        %879 = vmatprep.subr.mxu0 0.0
        %880 = vmatpush1.msra.mxu0 0.0
        %881 = vmatprep.subr.mxu0 0.0
        %882 = vmatpush1.msra.mxu0 0.0
        %883 = vmatprep.subr.mxu0 0.0
        %884 = vmatpush1.msra.mxu0 0.0
        %885 = vmatprep.subr.mxu0 0.0
        %886 = vmatpush1.msra.mxu0 0.0
        %887 = vmatprep.subr.mxu0 0.0
        %888 = vmatpush1.msra.mxu0 0.0
        %889 = vmatprep.subr.mxu0 0.0
        %890 = vmatpush1.msra.mxu0 0.0
        %891 = vmatprep.subr.mxu0 0.0
        %892 = vmatpush1.msra.mxu0 0.0
        %893 = vmatprep.subr.mxu0 0.0
        %894 = vmatpush1.msra.mxu0 0.0
        %895 = vmatprep.subr.mxu0 0.0
        %896 = vmatpush1.msra.mxu0 0.0
        %897 = vmatprep.subr.mxu0 0.0
        %898 = vmatpush1.msra.mxu0 0.0
        %899 = vmatprep.mubr.f32.mxu0 0.0
        %900 = vmatmul.mubr.f32.gmra.mrb[0].mxu0 %v723
        %v901 = vpop.f32.mrb[0].mxu0
        %v902 = vadd.f32 %v758, %v901
        %v903 = vpop.f32.mrb[0].mxu0
        %v904 = vadd.f32 %v758, %v903
        %905 = vmatprep.mubr.f32.mxu0 0.0
        %906 = vmatmul.mubr.f32.gmra.mrb[0].mxu0 %v724
        %v907 = vpop.f32.mrb[0].mxu0
        %v908 = vadd.f32 %v763, %v907
        %v909 = vpop.f32.mrb[0].mxu0
        %v910 = vadd.f32 %v763, %v909
        %911 = vmatprep.mubr.f32.mxu0 0.0
        %912 = vmatmul.mubr.f32.gmra.mrb[0].mxu0 %v725
        %v913 = vpop.f32.mrb[0].mxu0
        %v914 = vadd.f32 %v768, %v913
        %v915 = vpop.f32.mrb[0].mxu0
        %v916 = vadd.f32 %v768, %v915
        %917 = vmatprep.mubr.f32.mxu0 0.0
        %918 = vmatmul.mubr.f32.gmra.mrb[0].mxu0 %v726
        %v919 = vpop.f32.mrb[0].mxu0
        %v920 = vadd.f32 %v773, %v919
        %v921 = vpop.f32.mrb[0].mxu0
        %v922 = vadd.f32 %v773, %v921
        %923 = vmatprep.mubr.f32.mxu0 0.0
        %924 = vmatmul.mubr.f32.gmra.mrb[0].mxu0 %v727
        %v925 = vpop.f32.mrb[0].mxu0
        %v926 = vadd.f32 %v778, %v925
        %v927 = vpop.f32.mrb[0].mxu0
        %v928 = vadd.f32 %v778, %v927
        %929 = vmatprep.mubr.f32.mxu0 0.0
        %930 = vmatmul.mubr.f32.gmra.mrb[0].mxu0 %v728
        %v931 = vpop.f32.mrb[0].mxu0
        %v932 = vadd.f32 %v783, %v931
        %v933 = vpop.f32.mrb[0].mxu0
        %v934 = vadd.f32 %v783, %v933
        %935 = vmatprep.mubr.f32.mxu0 0.0
        %936 = vmatmul.mubr.f32.gmra.mrb[0].mxu0 %v729
        %v937 = vpop.f32.mrb[0].mxu0
        %v938 = vadd.f32 %v788, %v937
        %v939 = vpop.f32.mrb[0].mxu0
        %v940 = vadd.f32 %v788, %v939
        %941 = vmatprep.mubr.f32.mxu0 0.0
        %942 = vmatmul.mubr.f32.gmra.mrb[0].mxu0 %v730
        %v943 = vpop.f32.mrb[0].mxu0
        %v944 = vadd.f32 %v793, %v943
        %v945 = vpop.f32.mrb[0].mxu0
        %v946 = vadd.f32 %v793, %v945
        %947 = vmatprep.mubr.f32.mxu0 0.0
        %948 = vmatmul.mubr.f32.gmra.mrb[0].mxu0 %v731
        %v949 = vpop.f32.mrb[0].mxu0
        %v950 = vadd.f32 %v798, %v949
        %v951 = vpop.f32.mrb[0].mxu0
        %v952 = vadd.f32 %v798, %v951
        %953 = vmatprep.mubr.f32.mxu0 0.0
        %954 = vmatmul.mubr.f32.gmra.mrb[0].mxu0 %v732
        %v955 = vpop.f32.mrb[0].mxu0
        %v956 = vadd.f32 %v803, %v955
        %v957 = vpop.f32.mrb[0].mxu0
        %v958 = vadd.f32 %v803, %v957
        %959 = vmatprep.mubr.f32.mxu0 0.0
        %960 = vmatmul.mubr.f32.gmra.mrb[0].mxu0 %v733
        %v961 = vpop.f32.mrb[0].mxu0
        %v962 = vadd.f32 %v808, %v961
        %v963 = vpop.f32.mrb[0].mxu0
        %v964 = vadd.f32 %v808, %v963
        %965 = vmatprep.mubr.f32.mxu0 0.0
        %966 = vmatmul.mubr.f32.gmra.mrb[0].mxu0 %v734
        %v967 = vpop.f32.mrb[0].mxu0
        %v968 = vadd.f32 %v813, %v967
        %v969 = vpop.f32.mrb[0].mxu0
        %v970 = vadd.f32 %v813, %v969
        %971 = vmatprep.mubr.f32.mxu0 0.0
        %972 = vmatmul.mubr.f32.gmra.mrb[0].mxu0 %v735
        %v973 = vpop.f32.mrb[0].mxu0
        %v974 = vadd.f32 %v818, %v973
        %v975 = vpop.f32.mrb[0].mxu0
        %v976 = vadd.f32 %v818, %v975
        %977 = vmatprep.mubr.f32.mxu0 0.0
        %978 = vmatmul.mubr.f32.gmra.mrb[0].mxu0 %v736
        %v979 = vpop.f32.mrb[0].mxu0
        %v980 = vadd.f32 %v823, %v979
        %v981 = vpop.f32.mrb[0].mxu0
        %v982 = vadd.f32 %v823, %v981
        %983 = vmatprep.mubr.f32.mxu0 0.0
        %984 = vmatmul.mubr.f32.gmra.mrb[0].mxu0 %v737
        %v985 = vpop.f32.mrb[0].mxu0
        %v986 = vadd.f32 %v828, %v985
        %v987 = vpop.f32.mrb[0].mxu0
        %v988 = vadd.f32 %v828, %v987
        %989 = vmatprep.mubr.f32.mxu0 0.0
        %990 = vmatmul.mubr.f32.gmra.mrb[0].mxu0 %v738
        %v991 = vpop.f32.mrb[0].mxu0
        %v992 = vadd.f32 %v833, %v991
        %v993 = vpop.f32.mrb[0].mxu0
        %v994 = vadd.f32 %v833, %v993
        %995 = vdwg.mxu0
        %v996 = vtanh.pop %v902
        %v997 = vtanh.pop %v904
        %v998 = vtanh.pop %v908
        %v999 = vtanh.pop %v910
        %v1000 = vtanh.pop %v914
        %v1001 = vtanh.pop %v916
        %v1002 = vtanh.pop %v920
        %v1003 = vtanh.pop %v922
        %v1004 = vtanh.pop %v926
        %v1005 = vtanh.pop %v928
        %v1006 = vtanh.pop %v932
        %v1007 = vtanh.pop %v934
        %v1008 = vtanh.pop %v938
        %v1009 = vtanh.pop %v940
        %v1010 = vtanh.pop %v944
        %v1011 = vtanh.pop %v946
        %v1012 = vtanh.pop %v950
        %v1013 = vtanh.pop %v952
        %v1014 = vtanh.pop %v956
        %v1015 = vtanh.pop %v958
        %v1016 = vtanh.pop %v962
        %v1017 = vtanh.pop %v964
        %v1018 = vtanh.pop %v968
        %v1019 = vtanh.pop %v970
        %v1020 = vtanh.pop %v974
        %v1021 = vtanh.pop %v976
        %v1022 = vtanh.pop %v980
        %v1023 = vtanh.pop %v982
        %v1024 = vtanh.pop %v986
        %v1025 = vtanh.pop %v988
        %v1026 = vtanh.pop %v992
        %v1027 = vtanh.pop %v994
        %v1028 = vld [vmem:[%s5] sm:$0x1]
        %v1029 = vld [vmem:[#allocation2] sm:$0x1]
        %1031 = vset.pattern.permute.xlu0 0
        %1032 = vperm.xlu0 %1031, %v1029
        %v1033 = vpop.permute.xlu0 %1032
        %v1035 = vlaneseq
        %v1036 = vshrl.u32 %v1035, 7
        %v1037 = vsub.s32 0, %v1036
        %v1038 = vrot.slane %v1033, %v1037
        %1039 = vmatprep.subr.mxu0 %v997
        %1040 = vmatpush1.msra.mxu0 %v996
        %1041 = vmatprep.subr.mxu0 %v999
        %1042 = vmatpush1.msra.mxu0 %v998
        %1043 = vmatprep.subr.mxu0 %v1001
        %1044 = vmatpush1.msra.mxu0 %v1000
        %1045 = vmatprep.subr.mxu0 %v1003
        %1046 = vmatpush1.msra.mxu0 %v1002
        %1047 = vmatprep.subr.mxu0 %v1005
        %1048 = vmatpush1.msra.mxu0 %v1004
        %1049 = vmatprep.subr.mxu0 %v1007
        %1050 = vmatpush1.msra.mxu0 %v1006
        %1051 = vmatprep.subr.mxu0 %v1009
        %1052 = vmatpush1.msra.mxu0 %v1008
        %1053 = vmatprep.subr.mxu0 %v1011
        %1054 = vmatpush1.msra.mxu0 %v1010
        %1055 = vmatprep.subr.mxu0 %v1013
        %1056 = vmatpush1.msra.mxu0 %v1012
        %1057 = vmatprep.subr.mxu0 %v1015
        %1058 = vmatpush1.msra.mxu0 %v1014
        %1059 = vmatprep.subr.mxu0 %v1017
        %1060 = vmatpush1.msra.mxu0 %v1016
        %1061 = vmatprep.subr.mxu0 %v1019
        %1062 = vmatpush1.msra.mxu0 %v1018
        %1063 = vmatprep.subr.mxu0 %v1021
        %1064 = vmatpush1.msra.mxu0 %v1020
        %1065 = vmatprep.subr.mxu0 %v1023
        %1066 = vmatpush1.msra.mxu0 %v1022
        %1067 = vmatprep.subr.mxu0 %v1025
        %1068 = vmatpush1.msra.mxu0 %v1024
        %1069 = vmatprep.subr.mxu0 %v1027
        %1070 = vmatpush1.msra.mxu0 %v1026
        %1071 = vmatprep.subr.mxu0 0.0
        %1072 = vmatpush1.msra.mxu0 0.0
        %1073 = vmatprep.subr.mxu0 0.0
        %1074 = vmatpush1.msra.mxu0 0.0
        %1075 = vmatprep.subr.mxu0 0.0
        %1076 = vmatpush1.msra.mxu0 0.0
        %1077 = vmatprep.subr.mxu0 0.0
        %1078 = vmatpush1.msra.mxu0 0.0
        %1079 = vmatprep.subr.mxu0 0.0
        %1080 = vmatpush1.msra.mxu0 0.0
        %1081 = vmatprep.subr.mxu0 0.0
        %1082 = vmatpush1.msra.mxu0 0.0
        %1083 = vmatprep.subr.mxu0 0.0
        %1084 = vmatpush1.msra.mxu0 0.0
        %1085 = vmatprep.subr.mxu0 0.0
        %1086 = vmatpush1.msra.mxu0 0.0
        %1087 = vmatprep.subr.mxu0 0.0
        %1088 = vmatpush1.msra.mxu0 0.0
        %1089 = vmatprep.subr.mxu0 0.0
        %1090 = vmatpush1.msra.mxu0 0.0
        %1091 = vmatprep.subr.mxu0 0.0
        %1092 = vmatpush1.msra.mxu0 0.0
        %1093 = vmatprep.subr.mxu0 0.0
        %1094 = vmatpush1.msra.mxu0 0.0
        %1095 = vmatprep.subr.mxu0 0.0
        %1096 = vmatpush1.msra.mxu0 0.0
        %1097 = vmatprep.subr.mxu0 0.0
        %1098 = vmatpush1.msra.mxu0 0.0
        %1099 = vmatprep.subr.mxu0 0.0
        %1100 = vmatpush1.msra.mxu0 0.0
        %1101 = vmatprep.subr.mxu0 0.0
        %1102 = vmatpush1.msra.mxu0 0.0
        %1103 = vmatprep.mubr.f32.mxu0 0.0
        %1104 = vmatmul.mubr.f32.gmra.mrb[0].mxu0 %v1028
        %v1105 = vpop.f32.mrb[0].mxu0
        %v1106 = vadd.f32 %v1038, %v1105
        %v1107 = vpop.f32.mrb[0].mxu0
        %v1108 = vadd.f32 %v1038, %v1107
        %1109 = vdwg.mxu0
        %v1112 = vcombine.low %v1106, %v1108
        %v1114 = vunpack.c.l.s4 1966171168
        %v1115 = vunpack.c.0.s8 %v1114
        %v1116 = vlaneseq
        %v1117 = vshrl.u32 %v1116, 7
        %v1118 = vsub.s32 %v1115, %v1117
        %v1119 = vrot.slane %v1112, %v1118
        %v1121 = vunpack.c.l.s4 1966171168
        %v1122 = vunpack.c.0.s8 %v1121
        %v1123 = vlaneseq
        %v1124 = vshrl.u32 %v1123, 7
        %v1125 = vsub.s32 %v1122, %v1124
        %v1126 = vrot.slane %v1119, %v1125
        %v1128 = vlaneseq
        %vm1129 = vcmp.ge.s32.totalorder %v1128, 0
        %vm1130 = vcmp.lt.s32.totalorder %v1128, 256
        %vm1131 = vmand %vm1129, %vm1130
        %1132 = vst.msk [vmem:[%s274] sm:$0x3] %vm1131, %v1126
        %s1133 = sand.u32 %s183, 1
        %s1134 = scalar_lea.sflag [#allocation4], %s1133
        %s1135 = sand.u32 %s183, 1
        %s1136 = smul.addr %s1135, 2
        %s1137 = scalar_lea.vmem [#allocation3], %s1136
        // Predicated region
        $region49: #{tpu_custom_call.1} parent=47 // pred_check
          %p1138 = pneg %p193
        $region50: #{tpu_custom_call.1} parent=47 // pred_check_branch
          %1140 = sbr.rel (%p1138) target = $region52
        $region51: #{tpu_custom_call.1} parent=47 // pred_region
          %s1141 = smul.u32 2, %s23
          %s1143 = ssub.s32 32, 32
          %1144 = vsyncadd %s1134, %s1143
          %s1145 = smul.addr %s1141, 16
          %s1146 = scalar_lea.hbm %s7, %s1145
          %s1148 = sshll.u32 %s1137, 4
          %s1149 = int_to_ptr.vmem [resolvable:$true] %s1148
          %1151 = dma.vmem_to_hbm [thread:$0]  %s1149, 32, %s1146, %s1134
        $region52: #{tpu_custom_call.1} parent=47 // pred_fallthru
          _
      $region48: #{tpu_custom_call.1} parent=5 // pred_fallthru
        _
      %p1152 = scmp.le.s32.totalorder 2, %s18
      // Predicated region
      $region53: #{tpu_custom_call.1} parent=5 // pred_check
        %p1153 = pneg %p1152
      $region54: #{tpu_custom_call.1} parent=5 // pred_check_branch
        %1155 = sbr.rel (%p1153) target = $region56
      $region55: #{tpu_custom_call.1} parent=5 // pred_region
        %s1156 = ssub.s32 %s18, 2
        // Predicated region
        $region57: #{tpu_custom_call.1} parent=55 // pred_check
          %p1157 = pneg %p199
        $region58: #{tpu_custom_call.1} parent=55 // pred_check_branch
          %1159 = sbr.rel (%p1157) target = $region60
        $region59: #{tpu_custom_call.1} parent=55 // pred_region
          %s1160 = sand.u32 %s184, 1
          %s1161 = scalar_lea.sflag [#allocation4], %s1160
          %s1162 = sand.u32 %s184, 1
          %s1163 = smul.addr %s1162, 2
          %s1164 = scalar_lea.vmem [#allocation3], %s1163
          %1165 = dma.done %s1161, 32
        $region60: #{tpu_custom_call.1} parent=55 // pred_fallthru
          _
      $region56: #{tpu_custom_call.1} parent=5 // pred_fallthru
        _
    $region6: #{tpu_custom_call.1} parent=1 // loop_footer
      %s22 = sadd.s32 1, %s18
    $region7: #{tpu_custom_call.1} parent=1 // loop_footer_branch
      %17 = sbr.rel target = $region3
    $region8: #{tpu_custom_call.1} parent=1 // loop_exit
      _
    %1166 = vsyncpa [#allocation4], 1
    %s1167 = scalar_lea.sflag [#allocation4], 1
    %1168 = vsyncpa %s1167, 1

</llo_original>
